<compile_context>
chip_gen: v7x
topology: tpu7x:2x2x1
jax: 0.10.0
libtpu: 0.0.40
codegen_flags: <defaults>
</compile_context>

<pallas_src>
import jax
import jax.numpy as jnp
from jax.experimental import pallas as pl
from jax.experimental.pallas import tpu as pltpu


def _blockdiag_conv1x1_relu_kernel(x_ref, w_ref, b_ref, o_ref):
    # x_ref: (nb, C, T)   w_ref: (C, C)   b_ref: (C, 1)   o_ref: (nb, C, T)
    # T (spatial) is the lane axis; C sits on sublanes.
    w = w_ref[...]              # native dtype (bf16 or f32) straight to MXU
    b = b_ref[...]              # f32 bias, broadcast over lanes
    nb = x_ref.shape[0]
    # Short static loop over the folded batch rows: each dot is (C,C)@(C,T)
    # -> (C,T) in its natural lane-dense layout, accumulated in f32.  The
    # result is bias-added, ReLU'd, cast and stored in one fused pass so the
    # output tile is written exactly once (v5e has a single vst slot).
    for n in range(nb):
        y = jnp.dot(w, x_ref[n], preferred_element_type=jnp.float32)   # (C, T)
        o_ref[n] = jnp.maximum(y + b, 0.0).astype(o_ref.dtype)


def expand_layer_forward(x_nchw, weights, biases, groups,
                         max_row_bytes=4 << 20, target_block_bytes=4 << 20):
    """Deterministic ExpandLayer forward (all branches kept, original order).

    x_nchw : (N, C, H, W) with C = groups * Cg
    weights: list of `groups` matrices, each (Cg_out, Cg_in)  [conv convention]
    biases : list of `groups` vectors, each (Cg,)
    Returns a list of `groups` arrays, each (N, Cg, H, W).
    """
    N, C, H, W = x_nchw.shape
    cg = C // groups
    hw = H * W
    itemsize = jnp.dtype(x_nchw.dtype).itemsize

    # NCHW -> (N, C, H*W): pure contiguous reshape, no transposes.
    x3 = x_nchw.reshape(N, C, hw)

    # Block-diagonal weight (C, C): one matmul covers all groups; off-diagonal
    # zeros reproduce the per-group chunking exactly.  Cast to the input dtype
    # so bf16 inputs hit the MXU natively (no upcast pass).
    w_bd = jnp.zeros((C, C), dtype=x_nchw.dtype)
    for g in range(groups):
        w_bd = w_bd.at[g * cg:(g + 1) * cg, g * cg:(g + 1) * cg].set(
            jnp.asarray(weights[g], dtype=x_nchw.dtype))
    # Bias stays f32 (added to the f32 accumulator).
    b_full = jnp.concatenate(
        [jnp.asarray(b, dtype=jnp.float32) for b in biases]).reshape(C, 1)

    # --- Spatial tile: lane-dense (multiple of 128), bounded in bytes. -------
    if hw < 128:
        t = hw                                    # full extent (always legal)
    else:
        t_cap = max(128, (max_row_bytes // (C * itemsize)) // 128 * 128)
        t = max(128, min((hw // 128) * 128, t_cap))
    s_tiles = pl.cdiv(hw, t)                      # masked trailing block is OK

    # --- Fold batch rows so each grid step moves ~target_block_bytes. --------
    row_bytes = C * t * itemsize
    nb_target = max(1, target_block_bytes // row_bytes)
    nb = 1
    for d in range(1, N + 1):                     # largest divisor of N <= target
        if N % d == 0 and d <= nb_target:
            nb = d
    n_blocks = N // nb

    block_bytes = nb * row_bytes
    # Double-buffered input + output blocks, resident weights/bias, slack.
    vmem_bytes = int(4 * block_bytes + (C * C + C) * 4 + (1 << 20))
    vmem_bytes = max(4 << 20, min(vmem_bytes, 32 << 20))

    flops = 2 * N * hw * C * C
    bytes_accessed = 2 * N * C * hw * itemsize + (C * C + C) * itemsize

    out = pl.pallas_call(
        _blockdiag_conv1x1_relu_kernel,
        out_shape=jax.ShapeDtypeStruct((N, C, hw), x_nchw.dtype),
        grid_spec=pltpu.PrefetchScalarGridSpec(
            num_scalar_prefetch=0,
            grid=(n_blocks, s_tiles),
            in_specs=[
                pl.BlockSpec((nb, C, t), lambda n, s: (n, 0, s)),
                # Constant index maps -> weights / bias DMA'd once, resident.
                pl.BlockSpec((C, C), lambda n, s: (0, 0)),
                pl.BlockSpec((C, 1), lambda n, s: (0, 0)),
            ],
            out_specs=pl.BlockSpec((nb, C, t), lambda n, s: (n, 0, s)),
        ),
        compiler_params=pltpu.CompilerParams(
            dimension_semantics=("parallel", "parallel"),
            vmem_limit_bytes=vmem_bytes),
        cost_estimate=pl.CostEstimate(
            flops=flops, transcendentals=0, bytes_accessed=bytes_accessed),
    )(x3, w_bd, b_full)

    # (N, C, HW) -> per-group (N, Cg, H, W): contiguous reshape + leading-dim
    # slice only (group-major channel layout), no transposes.
    out5 = out.reshape(N, groups, cg, H, W)
    return [out5[:, g] for g in range(groups)]


if __name__ == "__main__":
    groups = 3
    N, cg, H, W = 2, 8, 16, 16
    C = groups * cg

    key = jax.random.PRNGKey(0)
    kx, *kws = jax.random.split(key, 1 + 2 * groups)
    x = jax.random.normal(kx, (N, C, H, W), dtype=jnp.float32)

    # (Cg_out, Cg_in) weights + (Cg,) biases, one per group.
    weights = [jax.random.normal(kws[2 * g], (cg, cg), dtype=jnp.float32) * 0.1
               for g in range(groups)]
    biases = [jax.random.normal(kws[2 * g + 1], (cg,), dtype=jnp.float32) * 0.1
              for g in range(groups)]

    feats = expand_layer_forward(x, weights, biases, groups)
    feats = [jax.block_until_ready(f) for f in feats]

    # Pure-JAX reference (1x1 conv + ReLU per group).
    ok = True
    for g in range(groups):
        xg = x[:, g * cg:(g + 1) * cg].reshape(N, cg, H * W)     # (N, Cg, HW)
        yr = jnp.einsum('oi,nit->not', weights[g], xg) + biases[g][None, :, None]
        yr = jnp.maximum(yr, 0.0).reshape(N, cg, H, W)
        ok = ok and bool(jnp.allclose(feats[g], yr, atol=1e-5, rtol=1e-5))
        ok = ok and feats[g].shape == (N, cg, H, W)

    if ok:
        print("KERNEL_OK")
    else:
        print("KERNEL_MISMATCH")
</pallas_src>

<mosaic_0001>
module attributes {stable_mosaic.version = 11 : i64} {
  func.func @_blockdiag_conv1x1_relu_kernel(%arg0: i32, %arg1: i32, %arg2: memref<2x24x256xf32, #tpu.memory_space<vmem>>, %arg3: memref<24x24xf32, #tpu.memory_space<vmem>>, %arg4: memref<24x1xf32, #tpu.memory_space<vmem>>, %arg5: memref<2x24x256xf32, #tpu.memory_space<vmem>>) attributes {dimension_semantics = [#tpu.dimension_semantics<parallel>, #tpu.dimension_semantics<parallel>], iteration_bounds = array<i64: 1, 1>, scalar_prefetch = 0 : i64, scratch_operands = 0 : i64, tpu.core_type = #tpu.core_type<tc>, window_params = [{transform_indices = @transform_0, window_bounds = array<i64: 2, 24, 256>}, {pipeline_mode = #tpu.pipeline_mode<synchronous>, transform_indices = @transform_1, window_bounds = array<i64: 24, 24>}, {pipeline_mode = #tpu.pipeline_mode<synchronous>, transform_indices = @transform_2, window_bounds = array<i64: 24, 1>}, {transform_indices = @transform_3, window_bounds = array<i64: 2, 24, 256>}]} {
    %c0 = arith.constant 0 : index
    %c0_0 = arith.constant 0 : index
    %0 = vector.load %arg3[%c0, %c0_0] : memref<24x24xf32, #tpu.memory_space<vmem>>, vector<24x24xf32>
    %c0_1 = arith.constant 0 : index
    %c0_2 = arith.constant 0 : index
    %1 = vector.load %arg4[%c0_1, %c0_2] : memref<24x1xf32, #tpu.memory_space<vmem>>, vector<24x1xf32>
    %c0_3 = arith.constant 0 : index
    %c0_4 = arith.constant 0 : index
    %c0_5 = arith.constant 0 : index
    %2 = vector.load %arg2[%c0_3, %c0_4, %c0_5] : memref<2x24x256xf32, #tpu.memory_space<vmem>>, vector<1x24x256xf32>
    %3 = vector.shape_cast %2 : vector<1x24x256xf32> to vector<24x256xf32>
    %cst = arith.constant dense<0.000000e+00> : vector<24x256xf32>
    %4 = tpu.matmul %0, %3, %cst {dimension_numbers = #tpu.dot_dimension_numbers<[1], [0], [0], [1], [0, 0, 1, 1], [], []>} : vector<24x24xf32>, vector<24x256xf32>, vector<24x256xf32> -> vector<24x256xf32>
    %5 = vector.broadcast %1 : vector<24x1xf32> to vector<24x256xf32>
    %6 = arith.addf %4, %5 : vector<24x256xf32>
    %cst_6 = arith.constant 0.000000e+00 : f32
    %7 = vector.broadcast %cst_6 : f32 to vector<24x256xf32>
    %8 = arith.maximumf %6, %7 : vector<24x256xf32>
    %c0_7 = arith.constant 0 : index
    %c0_8 = arith.constant 0 : index
    %c0_9 = arith.constant 0 : index
    %9 = vector.load %arg5[%c0_7, %c0_8, %c0_9] : memref<2x24x256xf32, #tpu.memory_space<vmem>>, vector<1x24x256xf32>
    %10 = vector.shape_cast %9 : vector<1x24x256xf32> to vector<24x256xf32>
    %11 = vector.shape_cast %8 : vector<24x256xf32> to vector<1x24x256xf32>
    tpu.vector_store %arg5[%c0_7, %c0_8, %c0_9], %11 {strides = array<i32>} : memref<2x24x256xf32, #tpu.memory_space<vmem>>, vector<1x24x256xf32>,
    %c1 = arith.constant 1 : index
    %c0_10 = arith.constant 0 : index
    %c0_11 = arith.constant 0 : index
    %12 = vector.load %arg2[%c1, %c0_10, %c0_11] : memref<2x24x256xf32, #tpu.memory_space<vmem>>, vector<1x24x256xf32>
    %13 = vector.shape_cast %12 : vector<1x24x256xf32> to vector<24x256xf32>
    %cst_12 = arith.constant dense<0.000000e+00> : vector<24x256xf32>
    %14 = tpu.matmul %0, %13, %cst_12 {dimension_numbers = #tpu.dot_dimension_numbers<[1], [0], [0], [1], [0, 0, 1, 1], [], []>} : vector<24x24xf32>, vector<24x256xf32>, vector<24x256xf32> -> vector<24x256xf32>
    %15 = vector.broadcast %1 : vector<24x1xf32> to vector<24x256xf32>
    %16 = arith.addf %14, %15 : vector<24x256xf32>
    %cst_13 = arith.constant 0.000000e+00 : f32
    %17 = vector.broadcast %cst_13 : f32 to vector<24x256xf32>
    %18 = arith.maximumf %16, %17 : vector<24x256xf32>
    %c1_14 = arith.constant 1 : index
    %c0_15 = arith.constant 0 : index
    %c0_16 = arith.constant 0 : index
    %19 = vector.load %arg5[%c1_14, %c0_15, %c0_16] : memref<2x24x256xf32, #tpu.memory_space<vmem>>, vector<1x24x256xf32>
    %20 = vector.shape_cast %19 : vector<1x24x256xf32> to vector<24x256xf32>
    %21 = vector.shape_cast %18 : vector<24x256xf32> to vector<1x24x256xf32>
    tpu.vector_store %arg5[%c1_14, %c0_15, %c0_16], %21 {strides = array<i32>} : memref<2x24x256xf32, #tpu.memory_space<vmem>>, vector<1x24x256xf32>,
    return
  }
  func.func @transform_0(%arg0: i32, %arg1: i32) -> (i32, i32, i32) {
    %c0_i32 = arith.constant 0 : i32
    %c0_i32_0 = arith.constant 0 : i32
    return %arg0, %c0_i32, %arg1 : i32, i32, i32
  }
  func.func @transform_1(%arg0: i32, %arg1: i32) -> (i32, i32) {
    %c0_i32 = arith.constant 0 : i32
    %c0_i32_0 = arith.constant 0 : i32
    %c0_i32_1 = arith.constant 0 : i32
    return %c0_i32, %c0_i32_0 : i32, i32
  }
  func.func @transform_2(%arg0: i32, %arg1: i32) -> (i32, i32) {
    %c0_i32 = arith.constant 0 : i32
    %c0_i32_0 = arith.constant 0 : i32
    %c0_i32_1 = arith.constant 0 : i32
    return %c0_i32, %c0_i32_0 : i32, i32
  }
  func.func @transform_3(%arg0: i32, %arg1: i32) -> (i32, i32, i32) {
    %c0_i32 = arith.constant 0 : i32
    %c0_i32_0 = arith.constant 0 : i32
    return %arg0, %c0_i32, %arg1 : i32, i32, i32
  }
}

</mosaic_0001>

<llo_original>
// kernel: tpu_custom_call.1
$region0: #{tpu_custom_call.1}
  #allocation0 [shape = 'u32[]', space=smem, size = 0x4, offset = 0x4, fixed_abs, tag = 'smem constant byte address 0x4 - core index']
  #allocation1 [shape = 'u32[144,128]{1,0:T(1,128)}', space=vmem, size = 0x12000, scoped, tag = 'internal scratch']
  %s0 = inlined_call_operand.hbm [shape: f32[2,24,256], index: 0, kind: input, shape index: {}]
  %s1 = inlined_call_operand.vmem [shape: f32[24,24], index: 1, kind: input, shape index: {}]
  %s2 = inlined_call_operand.vmem [shape: f32[24,1], index: 2, kind: input, shape index: {}]
  %s3 = inlined_call_operand.hbm [shape: f32[2,24,256], index: 3, kind: output, shape index: {}]
  %s4 = sld [smem:[#allocation0]]
  $region26: #{tpu_custom_call.1} parent=0
    _
  %s6 = ssub.s32 1, %s4
  %s7 = scalar_select 0, %s6, %s4
  $region1: #{tpu_custom_call.1} parent=0
    #allocation2 [shape = 'u8[49152]{0}', space=vmem, size = 0xc000, scoped, tag = 'input window, operand 0, single buffered']
    #allocation3 [shape = 's32[1]{0}', space=sflag, size = 0x4, scoped, tag = 'scoped memory for tpu_custom_call.1']
    #allocation4 [shape = 's32[1]{0}', space=sflag, size = 0x4, scoped, tag = 'scoped memory for tpu_custom_call.1']
    #allocation5 [shape = 'u8[49152]{0}', space=vmem, size = 0xc000, scoped, tag = 'output window, operand 0, single buffered']
    %8 = vsyncpa [#allocation3], 0
    %9 = vsyncpa [#allocation4], 0
    // Predicated region
    $region2: #{tpu_custom_call.1} parent=1 // pred_check
      _
    $region3: #{tpu_custom_call.1} parent=1 // pred_check_branch
      %11 = sbr.rel (0) target = $region5
    $region4: #{tpu_custom_call.1} parent=1 // pred_region
      %s13 = ssub.s32 1536, 1536
      %14 = vsyncadd [#allocation3], %s13
      %s15 = sshll.u32 [#allocation2], 4
      %s16 = int_to_ptr.vmem [resolvable:$true] %s15
      %21 = dma.hbm_to_vmem [thread:$0]  %s0, 1536, %s16, [#allocation3], 256, 256, 16
    $region5: #{tpu_custom_call.1} parent=1 // pred_fallthru
      _
    // Predicated region
    $region6: #{tpu_custom_call.1} parent=1 // pred_check
      _
    $region7: #{tpu_custom_call.1} parent=1 // pred_check_branch
      %23 = sbr.rel (0) target = $region9
    $region8: #{tpu_custom_call.1} parent=1 // pred_region
      _
    $region9: #{tpu_custom_call.1} parent=1 // pred_fallthru
      _
    // Predicated region
    $region10: #{tpu_custom_call.1} parent=1 // pred_check
      _
    $region11: #{tpu_custom_call.1} parent=1 // pred_check_branch
      %25 = sbr.rel (0) target = $region13
    $region12: #{tpu_custom_call.1} parent=1 // pred_region
      _
    $region13: #{tpu_custom_call.1} parent=1 // pred_fallthru
      _
    // Predicated region
    $region14: #{tpu_custom_call.1} parent=1 // pred_check
      _
    $region15: #{tpu_custom_call.1} parent=1 // pred_check_branch
      %27 = sbr.rel (0) target = $region17
    $region16: #{tpu_custom_call.1} parent=1 // pred_region
      %28 = dma.done [#allocation3], 1536
    $region17: #{tpu_custom_call.1} parent=1 // pred_fallthru
      _
    %v29 = vld [vmem:[%s1] sm:$0xff]
    %v30 = vld [vmem:[%s1 + $0x8] sm:$0xff]
    %v31 = vld [vmem:[%s1 + $0x10] sm:$0xff]
    %v32 = vld [vmem:[%s2] sm:$0xff]
    %v33 = vld [vmem:[%s2 + $0x8] sm:$0xff]
    %v34 = vld [vmem:[%s2 + $0x10] sm:$0xff]
    %v35 = vld [vmem:[#allocation2] sm:$0xff]
    %v36 = vld [vmem:[#allocation2 + $0x8] sm:$0xff]
    %v37 = vld [vmem:[#allocation2 + $0x10] sm:$0xff]
    %v38 = vld [vmem:[#allocation2 + $0x18] sm:$0xff]
    %v39 = vld [vmem:[#allocation2 + $0x20] sm:$0xff]
    %v40 = vld [vmem:[#allocation2 + $0x28] sm:$0xff]
    %42 = vset.pattern.permute.xlu0 0
    %43 = vperm.xlu0 %42, %v32
    %v44 = vpop.permute.xlu0 %43
    %47 = vset.pattern.permute.xlu0 0
    %48 = vperm.xlu0 %47, %v33
    %v49 = vpop.permute.xlu0 %48
    %52 = vset.pattern.permute.xlu0 0
    %53 = vperm.xlu0 %52, %v34
    %v54 = vpop.permute.xlu0 %53
    %vm56 = vcmask 195584
    %v58 = vsel %vm56, %v29, 0
    %v61 = vsel %vm56, %v30, 0
    %v64 = vsel %vm56, %v31, 0
    %66 = vmatprep.subr.mxu0 %v36
    %67 = vmatpush1.msra.mxu0 %v35
    %68 = vmatprep.subr.mxu0 %v38
    %69 = vmatpush1.msra.mxu0 %v37
    %70 = vmatprep.subr.mxu0 %v40
    %71 = vmatpush1.msra.mxu0 %v39
    %72 = vmatprep.subr.mxu0 0.0
    %73 = vmatpush1.msra.mxu0 0.0
    %74 = vmatprep.subr.mxu0 0.0
    %75 = vmatpush1.msra.mxu0 0.0
    %76 = vmatprep.subr.mxu0 0.0
    %77 = vmatpush1.msra.mxu0 0.0
    %78 = vmatprep.subr.mxu0 0.0
    %79 = vmatpush1.msra.mxu0 0.0
    %80 = vmatprep.subr.mxu0 0.0
    %81 = vmatpush1.msra.mxu0 0.0
    %82 = vmatprep.subr.mxu0 0.0
    %83 = vmatpush1.msra.mxu0 0.0
    %84 = vmatprep.subr.mxu0 0.0
    %85 = vmatpush1.msra.mxu0 0.0
    %86 = vmatprep.subr.mxu0 0.0
    %87 = vmatpush1.msra.mxu0 0.0
    %88 = vmatprep.subr.mxu0 0.0
    %89 = vmatpush1.msra.mxu0 0.0
    %90 = vmatprep.subr.mxu0 0.0
    %91 = vmatpush1.msra.mxu0 0.0
    %92 = vmatprep.subr.mxu0 0.0
    %93 = vmatpush1.msra.mxu0 0.0
    %94 = vmatprep.subr.mxu0 0.0
    %95 = vmatpush1.msra.mxu0 0.0
    %96 = vmatprep.subr.mxu0 0.0
    %97 = vmatpush1.msra.mxu0 0.0
    %98 = vmatprep.subr.mxu0 0.0
    %99 = vmatpush1.msra.mxu0 0.0
    %100 = vmatprep.subr.mxu0 0.0
    %101 = vmatpush1.msra.mxu0 0.0
    %102 = vmatprep.subr.mxu0 0.0
    %103 = vmatpush1.msra.mxu0 0.0
    %104 = vmatprep.subr.mxu0 0.0
    %105 = vmatpush1.msra.mxu0 0.0
    %106 = vmatprep.subr.mxu0 0.0
    %107 = vmatpush1.msra.mxu0 0.0
    %108 = vmatprep.subr.mxu0 0.0
    %109 = vmatpush1.msra.mxu0 0.0
    %110 = vmatprep.subr.mxu0 0.0
    %111 = vmatpush1.msra.mxu0 0.0
    %112 = vmatprep.subr.mxu0 0.0
    %113 = vmatpush1.msra.mxu0 0.0
    %114 = vmatprep.subr.mxu0 0.0
    %115 = vmatpush1.msra.mxu0 0.0
    %116 = vmatprep.subr.mxu0 0.0
    %117 = vmatpush1.msra.mxu0 0.0
    %118 = vmatprep.subr.mxu0 0.0
    %119 = vmatpush1.msra.mxu0 0.0
    %120 = vmatprep.subr.mxu0 0.0
    %121 = vmatpush1.msra.mxu0 0.0
    %122 = vmatprep.subr.mxu0 0.0
    %123 = vmatpush1.msra.mxu0 0.0
    %124 = vmatprep.subr.mxu0 0.0
    %125 = vmatpush1.msra.mxu0 0.0
    %126 = vmatprep.subr.mxu0 0.0
    %127 = vmatpush1.msra.mxu0 0.0
    %128 = vmatprep.subr.mxu0 0.0
    %129 = vmatpush1.msra.mxu0 0.0
    %130 = vmatprep.mubr.f32.mxu0 0.0
    %131 = vmatmul.mubr.f32.gmra.mrb[0].mxu0 %v58
    %v132 = vpop.f32.mrb[0].mxu0
    %v133 = vadd.f32 %v44, %v132
    %v134 = vpop.f32.mrb[0].mxu0
    %v135 = vadd.f32 %v44, %v134
    %136 = vmatprep.mubr.f32.mxu0 0.0
    %137 = vmatmul.mubr.f32.gmra.mrb[0].mxu0 %v61
    %v138 = vpop.f32.mrb[0].mxu0
    %v139 = vadd.f32 %v49, %v138
    %v140 = vpop.f32.mrb[0].mxu0
    %v141 = vadd.f32 %v49, %v140
    %142 = vmatprep.mubr.f32.mxu0 0.0
    %143 = vmatmul.mubr.f32.gmra.mrb[0].mxu0 %v64
    %v144 = vpop.f32.mrb[0].mxu0
    %v145 = vadd.f32 %v54, %v144
    %v146 = vpop.f32.mrb[0].mxu0
    %v147 = vadd.f32 %v54, %v146
    %148 = vdwg.mxu0
    %v149 = vmax.f32 %v133, 0.0
    %v150 = vmax.f32 %v135, 0.0
    %v151 = vmax.f32 %v139, 0.0
    %v152 = vmax.f32 %v141, 0.0
    %v153 = vmax.f32 %v145, 0.0
    %v154 = vmax.f32 %v147, 0.0
    %155 = vst [vmem:[#allocation5] sm:$0xff] %v149
    %156 = vst [vmem:[#allocation5 + $0x8] sm:$0xff] %v150
    %157 = vst [vmem:[#allocation5 + $0x10] sm:$0xff] %v151
    %158 = vst [vmem:[#allocation5 + $0x18] sm:$0xff] %v152
    %159 = vst [vmem:[#allocation5 + $0x20] sm:$0xff] %v153
    %160 = vst [vmem:[#allocation5 + $0x28] sm:$0xff] %v154
    %s161 = scalar_lea.vmem [#allocation2], 48
    %v162 = vld [vmem:[%s161] sm:$0xff]
    %v163 = vld [vmem:[%s161 + $0x8] sm:$0xff]
    %v164 = vld [vmem:[%s161 + $0x10] sm:$0xff]
    %v165 = vld [vmem:[%s161 + $0x18] sm:$0xff]
    %v166 = vld [vmem:[%s161 + $0x20] sm:$0xff]
    %v167 = vld [vmem:[%s161 + $0x28] sm:$0xff]
    %168 = vmatprep.subr.mxu0 %v163
    %169 = vmatpush1.msra.mxu0 %v162
    %170 = vmatprep.subr.mxu0 %v165
    %171 = vmatpush1.msra.mxu0 %v164
    %172 = vmatprep.subr.mxu0 %v167
    %173 = vmatpush1.msra.mxu0 %v166
    %174 = vmatprep.subr.mxu0 0.0
    %175 = vmatpush1.msra.mxu0 0.0
    %176 = vmatprep.subr.mxu0 0.0
    %177 = vmatpush1.msra.mxu0 0.0
    %178 = vmatprep.subr.mxu0 0.0
    %179 = vmatpush1.msra.mxu0 0.0
    %180 = vmatprep.subr.mxu0 0.0
    %181 = vmatpush1.msra.mxu0 0.0
    %182 = vmatprep.subr.mxu0 0.0
    %183 = vmatpush1.msra.mxu0 0.0
    %184 = vmatprep.subr.mxu0 0.0
    %185 = vmatpush1.msra.mxu0 0.0
    %186 = vmatprep.subr.mxu0 0.0
    %187 = vmatpush1.msra.mxu0 0.0
    %188 = vmatprep.subr.mxu0 0.0
    %189 = vmatpush1.msra.mxu0 0.0
    %190 = vmatprep.subr.mxu0 0.0
    %191 = vmatpush1.msra.mxu0 0.0
    %192 = vmatprep.subr.mxu0 0.0
    %193 = vmatpush1.msra.mxu0 0.0
    %194 = vmatprep.subr.mxu0 0.0
    %195 = vmatpush1.msra.mxu0 0.0
    %196 = vmatprep.subr.mxu0 0.0
    %197 = vmatpush1.msra.mxu0 0.0
    %198 = vmatprep.subr.mxu0 0.0
    %199 = vmatpush1.msra.mxu0 0.0
    %200 = vmatprep.subr.mxu0 0.0
    %201 = vmatpush1.msra.mxu0 0.0
    %202 = vmatprep.subr.mxu0 0.0
    %203 = vmatpush1.msra.mxu0 0.0
    %204 = vmatprep.subr.mxu0 0.0
    %205 = vmatpush1.msra.mxu0 0.0
    %206 = vmatprep.subr.mxu0 0.0
    %207 = vmatpush1.msra.mxu0 0.0
    %208 = vmatprep.subr.mxu0 0.0
    %209 = vmatpush1.msra.mxu0 0.0
    %210 = vmatprep.subr.mxu0 0.0
    %211 = vmatpush1.msra.mxu0 0.0
    %212 = vmatprep.subr.mxu0 0.0
    %213 = vmatpush1.msra.mxu0 0.0
    %214 = vmatprep.subr.mxu0 0.0
    %215 = vmatpush1.msra.mxu0 0.0
    %216 = vmatprep.subr.mxu0 0.0
    %217 = vmatpush1.msra.mxu0 0.0
    %218 = vmatprep.subr.mxu0 0.0
    %219 = vmatpush1.msra.mxu0 0.0
    %220 = vmatprep.subr.mxu0 0.0
    %221 = vmatpush1.msra.mxu0 0.0
    %222 = vmatprep.subr.mxu0 0.0
    %223 = vmatpush1.msra.mxu0 0.0
    %224 = vmatprep.subr.mxu0 0.0
    %225 = vmatpush1.msra.mxu0 0.0
    %226 = vmatprep.subr.mxu0 0.0
    %227 = vmatpush1.msra.mxu0 0.0
    %228 = vmatprep.subr.mxu0 0.0
    %229 = vmatpush1.msra.mxu0 0.0
    %230 = vmatprep.subr.mxu0 0.0
    %231 = vmatpush1.msra.mxu0 0.0
    %232 = vmatprep.mubr.f32.mxu0 0.0
    %233 = vmatmul.mubr.f32.gmra.mrb[0].mxu0 %v58
    %v234 = vpop.f32.mrb[0].mxu0
    %v235 = vadd.f32 %v44, %v234
    %v236 = vpop.f32.mrb[0].mxu0
    %v237 = vadd.f32 %v44, %v236
    %238 = vmatprep.mubr.f32.mxu0 0.0
    %239 = vmatmul.mubr.f32.gmra.mrb[0].mxu0 %v61
    %v240 = vpop.f32.mrb[0].mxu0
    %v241 = vadd.f32 %v49, %v240
    %v242 = vpop.f32.mrb[0].mxu0
    %v243 = vadd.f32 %v49, %v242
    %244 = vmatprep.mubr.f32.mxu0 0.0
    %245 = vmatmul.mubr.f32.gmra.mrb[0].mxu0 %v64
    %v246 = vpop.f32.mrb[0].mxu0
    %v247 = vadd.f32 %v54, %v246
    %v248 = vpop.f32.mrb[0].mxu0
    %v249 = vadd.f32 %v54, %v248
    %250 = vdwg.mxu0
    %v251 = vmax.f32 %v235, 0.0
    %v252 = vmax.f32 %v237, 0.0
    %v253 = vmax.f32 %v241, 0.0
    %v254 = vmax.f32 %v243, 0.0
    %v255 = vmax.f32 %v247, 0.0
    %v256 = vmax.f32 %v249, 0.0
    %s257 = scalar_lea.vmem [#allocation5], 48
    %258 = vst [vmem:[%s257] sm:$0xff] %v251
    %259 = vst [vmem:[%s257 + $0x8] sm:$0xff] %v252
    %260 = vst [vmem:[%s257 + $0x10] sm:$0xff] %v253
    %261 = vst [vmem:[%s257 + $0x18] sm:$0xff] %v254
    %262 = vst [vmem:[%s257 + $0x20] sm:$0xff] %v255
    %263 = vst [vmem:[%s257 + $0x28] sm:$0xff] %v256
    // Predicated region
    $region18: #{tpu_custom_call.1} parent=1 // pred_check
      _
    $region19: #{tpu_custom_call.1} parent=1 // pred_check_branch
      %265 = sbr.rel (0) target = $region21
    $region20: #{tpu_custom_call.1} parent=1 // pred_region
      %s267 = ssub.s32 1536, 1536
      %268 = vsyncadd [#allocation4], %s267
      %s269 = sshll.u32 [#allocation5], 4
      %s270 = int_to_ptr.vmem [resolvable:$true] %s269
      %275 = dma.vmem_to_hbm [thread:$0]  %s270, 1536, %s3, [#allocation4], 256, 256, 16
    $region21: #{tpu_custom_call.1} parent=1 // pred_fallthru
      _
    // Predicated region
    $region22: #{tpu_custom_call.1} parent=1 // pred_check
      _
    $region23: #{tpu_custom_call.1} parent=1 // pred_check_branch
      %277 = sbr.rel (0) target = $region25
    $region24: #{tpu_custom_call.1} parent=1 // pred_region
      %278 = dma.done [#allocation4], 1536
    $region25: #{tpu_custom_call.1} parent=1 // pred_fallthru
      _
    %279 = vsyncpa [#allocation3], 1
    %280 = vsyncpa [#allocation4], 1

</llo_original>
